<compile_context>
chip_gen: v7x
topology: tpu7x:2x2x1
jax: 0.10.0
libtpu: 0.0.40
codegen_flags: <defaults>
</compile_context>

<pallas_src>
import functools

import jax
import jax.numpy as jnp
from jax import lax
from jax.experimental import pallas as pl
from jax.experimental.pallas import tpu as pltpu

_LANE = 128
_MIB = 1 << 20


def _round_up(n, m):
    return ((n + m - 1) // m) * m


def _cdiv(a, b):
    return (a + b - 1) // b


def _default_bf16_epilogue():
    """bf16 VALU exists on v6e / v7x; keep the f32 epilogue elsewhere (v5e...)."""
    try:
        kind = jax.devices()[0].device_kind.lower()
    except Exception:  # pragma: no cover - no device info
        return False
    return any(tag in kind for tag in ("v6", "v7", "7x"))


def prepare_params(params, *, bf16_epilogue=None):
    """One-time conversion: bf16 MXU weights, pre-transposed (1, 64) w5 row,
    biases in the epilogue dtype.  Call once and reuse (avoids per-call
    convert/transpose HBM traffic)."""
    if bf16_epilogue is None:
        bf16_epilogue = _default_bf16_epilogue()
    bias_dtype = jnp.bfloat16 if bf16_epilogue else jnp.float32
    prepped = {}
    for li in range(1, 5):
        prepped[f"w{li}"] = params[f"w{li}"].astype(jnp.bfloat16)
        prepped[f"b{li}"] = params[f"b{li}"].astype(bias_dtype)
    prepped["w5"] = params["w5"].T.astype(jnp.bfloat16)   # (1, 64) row
    prepped["b5"] = params["b5"].astype(jnp.float32)       # fc5 output stays f32
    return prepped


def _mlp_kernel(x_ref,
                w1_ref, b1_ref,
                w2_ref, b2_ref,
                w3_ref, b3_ref,
                w4_ref, b4_ref,
                w5_ref, b5_ref,
                o_ref,
                *, num_sub, bf16_epilogue):
    tile = x_ref.shape[0]
    sub = tile // num_sub

    # Load the (tiny) resident weights once per grid step.
    w1, w2, w3, w4, w5 = (w1_ref[...], w2_ref[...], w3_ref[...],
                          w4_ref[...], w5_ref[...])
    b1, b2, b3, b4, b5 = (b1_ref[...], b2_ref[...], b3_ref[...],
                          b4_ref[...], b5_ref[...])

    def layer(h_bf16, w_bf16, b):
        acc = jnp.dot(h_bf16, w_bf16, preferred_element_type=jnp.float32)
        if bf16_epilogue:
            # v6e/v7x: bias-add + ReLU in bf16 (2x elems/vreg op); result is
            # already bf16 for the next matmul.
            return jnp.maximum(acc.astype(jnp.bfloat16) + b, 0)
        # v5e path: no bf16 VALU -> f32 epilogue, then cast for the MXU.
        return jnp.maximum(acc + b, 0.0).astype(jnp.bfloat16)

    # num_sub independent sub-tile chains, Python-unrolled, so the scheduler
    # can overlap one chain's MXU matmul with the other's VPU epilogue.
    for j in range(num_sub):
        lo, hi = j * sub, (j + 1) * sub
        h = x_ref[lo:hi, :].astype(jnp.bfloat16)
        h = layer(h, w1, b1)          # fc1 + ReLU   (dropout = identity, eval)
        h = layer(h, w2, b2)          # fc2 + ReLU
        h = layer(h, w3, b3)          # fc3 + ReLU
        h = layer(h, w4, b4)          # fc4 + ReLU -> (sub, 64) bf16
        # fc5 (out_features == 1): contract dim 1 of both operands (trans_b
        # style) so the result is a lane-dense (1, sub) row with no
        # materialized transpose.
        out_row = lax.dot_general(
            w5, h,
            dimension_numbers=(((1,), (1,)), ((), ())),
            preferred_element_type=jnp.float32) + b5
        o_ref[:, lo:hi] = out_row.astype(o_ref.dtype)


def _param_bytes(prepped):
    return sum(int(a.size) * a.dtype.itemsize for a in prepped.values())


def _vmem_estimate(tile, D, itemsize, param_bytes):
    x_db = 2 * tile * D * itemsize             # x double buffer
    out_db = 2 * max(tile, _LANE) * 4          # output double buffer (padded)
    w_db = 2 * param_bytes                     # weight/bias buffers
    act = 6 * tile * 256 * 4                   # live f32 intermediates headroom
    return x_db + out_db + w_db + act


def _choose_tile(B, batch_tile):
    small = _round_up(B, 8)
    if small <= _LANE:
        # Tiny batch: one full-array tile.  Output lane width < 128 -> masked
        # vst.msk stores; that is a perf (not correctness) tradeoff we accept
        # for small batches.
        return small
    assert batch_tile % _LANE == 0, "batch_tile must be a multiple of 128"
    # Guarantee >= 2 grid steps so dimension_semantics=("parallel",) can shard
    # the batch axis across both TensorCores on v7x.
    return max(_LANE, min(batch_tile, _round_up(_cdiv(B, 2), _LANE)))


def io_neural_network_forward(x, prepped_params, *, batch_tile=512):
    """Run the fused MLP Pallas kernel.

    x:              [B, input_dim] float32
    prepped_params: output of prepare_params() (bf16 [in,out] weights,
                    (1, 64) w5 row, biases in epilogue dtype)
    returns         [B, 1] in x.dtype
    """
    B, D = x.shape
    assert prepped_params["w5"].shape[0] == 1, "pass prepare_params() output"
    bf16_epilogue = prepped_params["b1"].dtype == jnp.bfloat16

    param_bytes = _param_bytes(prepped_params)
    tile = _choose_tile(B, batch_tile)

    # Explicit VMEM budgeting (v7x: 64 MiB per TC; v5e default scoped 16 MiB).
    # Shrink the tile for very wide inputs; raise the scoped limit when needed.
    while tile > _LANE and tile % _LANE == 0 and \
            _vmem_estimate(tile, D, x.dtype.itemsize, param_bytes) > 40 * _MIB:
        tile = max(_LANE, ((tile // 2) // _LANE) * _LANE)
    vmem_est = _vmem_estimate(tile, D, x.dtype.itemsize, param_bytes)

    num_tiles = _cdiv(B, tile)
    padded_rows = num_tiles * tile             # output padded; x is NOT padded
    num_sub = 2 if tile % 256 == 0 else 1

    w1, b1 = prepped_params["w1"], prepped_params["b1"]
    w2, b2 = prepped_params["w2"], prepped_params["b2"]
    w3, b3 = prepped_params["w3"], prepped_params["b3"]
    w4, b4 = prepped_params["w4"], prepped_params["b4"]
    w5, b5 = prepped_params["w5"], prepped_params["b5"]

    def full_spec(arr):
        # Whole (tiny) array in VMEM; constant block index across the grid, so
        # Pallas only DMAs it once.
        return pl.BlockSpec(arr.shape, lambda i: (0, 0))

    flops = 2 * padded_rows * (D * 128 + 128 * 256 + 256 * 128 + 128 * 64 + 64)
    bytes_accessed = (int(x.size) * x.dtype.itemsize
                      + padded_rows * x.dtype.itemsize
                      + param_bytes)

    compiler_kwargs = dict(dimension_semantics=("parallel",))
    if vmem_est > 12 * _MIB:
        compiler_kwargs["vmem_limit_bytes"] = int(min(vmem_est + 4 * _MIB,
                                                      64 * _MIB))

    kernel = functools.partial(_mlp_kernel,
                               num_sub=num_sub,
                               bf16_epilogue=bf16_epilogue)

    out_row = pl.pallas_call(
        kernel,
        out_shape=jax.ShapeDtypeStruct((1, padded_rows), x.dtype),
        grid_spec=pltpu.PrefetchScalarGridSpec(
            num_scalar_prefetch=0,
            grid=(num_tiles,),
            in_specs=[
                pl.BlockSpec((tile, D), lambda i: (i, 0)),      # x tile
                full_spec(w1), full_spec(b1),
                full_spec(w2), full_spec(b2),
                full_spec(w3), full_spec(b3),
                full_spec(w4), full_spec(b4),
                full_spec(w5), full_spec(b5),
            ],
            out_specs=pl.BlockSpec((1, tile), lambda i: (0, i)),  # lane-dense
        ),
        compiler_params=pltpu.CompilerParams(**compiler_kwargs),
        cost_estimate=pl.CostEstimate(
            flops=flops, transcendentals=0, bytes_accessed=bytes_accessed),
    )(x, w1, b1, w2, b2, w3, b3, w4, b4, w5, b5)

    # Padded tail lanes (beyond B) hold garbage derived from out-of-bounds x
    # rows; they are discarded here.  Safe because there is no cross-row
    # reduction anywhere in the kernel.
    return out_row.reshape(padded_rows, 1)[:B]


def init_params(key, input_dim):
    """Deterministic init matching nn.Linear default: U(-1/sqrt(fan_in), 1/sqrt(fan_in))."""
    dims = [input_dim, 128, 256, 128, 64, 1]
    params = {}
    for li in range(5):
        fan_in, fan_out = dims[li], dims[li + 1]
        key, kw, kb = jax.random.split(key, 3)
        bound = 1.0 / jnp.sqrt(jnp.float32(fan_in))
        # stored as [in, out] so the kernel can do x @ W directly
        params[f"w{li + 1}"] = jax.random.uniform(
            kw, (fan_in, fan_out), jnp.float32, -bound, bound)
        params[f"b{li + 1}"] = jax.random.uniform(
            kb, (1, fan_out), jnp.float32, -bound, bound)
    return params


def reference_forward(x, params):
    h = x
    for li in range(1, 5):
        h = jnp.maximum(h @ params[f"w{li}"] + params[f"b{li}"], 0.0)
    return h @ params["w5"] + params["b5"]


if __name__ == "__main__":
    INPUT_DIM = 32

    key = jax.random.PRNGKey(0)
    key, kp = jax.random.split(key)
    params = init_params(kp, INPUT_DIM)
    prepped = prepare_params(params)     # one-time bf16 cast / w5 transpose

    # Small batch (single masked tile) and a larger batch (2 grid steps,
    # 2 interleaved sub-tile chains) to exercise both code paths.
    for batch in (16, 384):
        key, kx = jax.random.split(key)
        x = jax.random.normal(kx, (batch, INPUT_DIM), jnp.float32)

        out = io_neural_network_forward(x, prepped)
        out = jax.block_until_ready(out)

        ref = reference_forward(x, params)
        assert out.shape == (batch, 1), out.shape
        # bf16 MXU operands / bf16 epilogue vs f32 reference -> loosened tol.
        assert jnp.allclose(out, ref, atol=5e-2, rtol=5e-2), \
            f"mismatch vs reference at batch={batch}"

    print("KERNEL_OK")
</pallas_src>

<mosaic_0001>
module attributes {stable_mosaic.version = 11 : i64} {
  func.func @_mlp_kernel(%arg0: i32, %arg1: memref<16x32xf32, #tpu.memory_space<vmem>>, %arg2: memref<32x128xbf16, #tpu.memory_space<vmem>>, %arg3: memref<1x128xf32, #tpu.memory_space<vmem>>, %arg4: memref<128x256xbf16, #tpu.memory_space<vmem>>, %arg5: memref<1x256xf32, #tpu.memory_space<vmem>>, %arg6: memref<256x128xbf16, #tpu.memory_space<vmem>>, %arg7: memref<1x128xf32, #tpu.memory_space<vmem>>, %arg8: memref<128x64xbf16, #tpu.memory_space<vmem>>, %arg9: memref<1x64xf32, #tpu.memory_space<vmem>>, %arg10: memref<1x64xbf16, #tpu.memory_space<vmem>>, %arg11: memref<1x1xf32, #tpu.memory_space<vmem>>, %arg12: memref<1x16xf32, #tpu.memory_space<vmem>>) attributes {dimension_semantics = [#tpu.dimension_semantics<parallel>], iteration_bounds = array<i64: 1>, scalar_prefetch = 0 : i64, scratch_operands = 0 : i64, tpu.core_type = #tpu.core_type<tc>, window_params = [{transform_indices = @transform_0, window_bounds = array<i64: 16, 32>}, {pipeline_mode = #tpu.pipeline_mode<synchronous>, transform_indices = @transform_1, window_bounds = array<i64: 32, 128>}, {pipeline_mode = #tpu.pipeline_mode<synchronous>, transform_indices = @transform_2, window_bounds = array<i64: 1, 128>}, {pipeline_mode = #tpu.pipeline_mode<synchronous>, transform_indices = @transform_3, window_bounds = array<i64: 128, 256>}, {pipeline_mode = #tpu.pipeline_mode<synchronous>, transform_indices = @transform_4, window_bounds = array<i64: 1, 256>}, {pipeline_mode = #tpu.pipeline_mode<synchronous>, transform_indices = @transform_5, window_bounds = array<i64: 256, 128>}, {pipeline_mode = #tpu.pipeline_mode<synchronous>, transform_indices = @transform_6, window_bounds = array<i64: 1, 128>}, {pipeline_mode = #tpu.pipeline_mode<synchronous>, transform_indices = @transform_7, window_bounds = array<i64: 128, 64>}, {pipeline_mode = #tpu.pipeline_mode<synchronous>, transform_indices = @transform_8, window_bounds = array<i64: 1, 64>}, {pipeline_mode = #tpu.pipeline_mode<synchronous>, transform_indices = @transform_9, window_bounds = array<i64: 1, 64>}, {pipeline_mode = #tpu.pipeline_mode<synchronous>, transform_indices = @transform_10, window_bounds = array<i64: 1, 1>}, {transform_indices = @transform_11, window_bounds = array<i64: 1, 16>}]} {
    %c0 = arith.constant 0 : index
    %c0_0 = arith.constant 0 : index
    %0 = vector.load %arg2[%c0, %c0_0] : memref<32x128xbf16, #tpu.memory_space<vmem>>, vector<32x128xbf16>
    %c0_1 = arith.constant 0 : index
    %c0_2 = arith.constant 0 : index
    %1 = vector.load %arg4[%c0_1, %c0_2] : memref<128x256xbf16, #tpu.memory_space<vmem>>, vector<128x256xbf16>
    %c0_3 = arith.constant 0 : index
    %c0_4 = arith.constant 0 : index
    %2 = vector.load %arg6[%c0_3, %c0_4] : memref<256x128xbf16, #tpu.memory_space<vmem>>, vector<256x128xbf16>
    %c0_5 = arith.constant 0 : index
    %c0_6 = arith.constant 0 : index
    %3 = vector.load %arg8[%c0_5, %c0_6] : memref<128x64xbf16, #tpu.memory_space<vmem>>, vector<128x64xbf16>
    %c0_7 = arith.constant 0 : index
    %c0_8 = arith.constant 0 : index
    %4 = vector.load %arg10[%c0_7, %c0_8] : memref<1x64xbf16, #tpu.memory_space<vmem>>, vector<1x64xbf16>
    %c0_9 = arith.constant 0 : index
    %c0_10 = arith.constant 0 : index
    %5 = vector.load %arg3[%c0_9, %c0_10] : memref<1x128xf32, #tpu.memory_space<vmem>>, vector<1x128xf32>
    %c0_11 = arith.constant 0 : index
    %c0_12 = arith.constant 0 : index
    %6 = vector.load %arg5[%c0_11, %c0_12] : memref<1x256xf32, #tpu.memory_space<vmem>>, vector<1x256xf32>
    %c0_13 = arith.constant 0 : index
    %c0_14 = arith.constant 0 : index
    %7 = vector.load %arg7[%c0_13, %c0_14] : memref<1x128xf32, #tpu.memory_space<vmem>>, vector<1x128xf32>
    %c0_15 = arith.constant 0 : index
    %c0_16 = arith.constant 0 : index
    %8 = vector.load %arg9[%c0_15, %c0_16] : memref<1x64xf32, #tpu.memory_space<vmem>>, vector<1x64xf32>
    %c0_17 = arith.constant 0 : index
    %c0_18 = arith.constant 0 : index
    %9 = vector.load %arg11[%c0_17, %c0_18] : memref<1x1xf32, #tpu.memory_space<vmem>>, vector<1x1xf32>
    %c0_19 = arith.constant 0 : index
    %c0_20 = arith.constant 0 : index
    %10 = vector.load %arg1[%c0_19, %c0_20] : memref<16x32xf32, #tpu.memory_space<vmem>>, vector<16x32xf32>
    %11 = arith.truncf %10 : vector<16x32xf32> to vector<16x32xbf16>
    %cst = arith.constant dense<0.000000e+00> : vector<16x128xf32>
    %12 = tpu.matmul %11, %0, %cst {dimension_numbers = #tpu.dot_dimension_numbers<[1], [0], [0], [1], [0, 0, 1, 1], [], []>} : vector<16x32xbf16>, vector<32x128xbf16>, vector<16x128xf32> -> vector<16x128xf32>
    %13 = vector.broadcast %5 : vector<1x128xf32> to vector<16x128xf32>
    %14 = arith.addf %12, %13 : vector<16x128xf32>
    %cst_21 = arith.constant 0.000000e+00 : f32
    %15 = vector.broadcast %cst_21 : f32 to vector<16x128xf32>
    %16 = arith.maximumf %14, %15 : vector<16x128xf32>
    %17 = arith.truncf %16 : vector<16x128xf32> to vector<16x128xbf16>
    %cst_22 = arith.constant dense<0.000000e+00> : vector<16x256xf32>
    %18 = tpu.matmul %17, %1, %cst_22 {dimension_numbers = #tpu.dot_dimension_numbers<[1], [0], [0], [1], [0, 0, 1, 1], [], []>} : vector<16x128xbf16>, vector<128x256xbf16>, vector<16x256xf32> -> vector<16x256xf32>
    %19 = vector.broadcast %6 : vector<1x256xf32> to vector<16x256xf32>
    %20 = arith.addf %18, %19 : vector<16x256xf32>
    %cst_23 = arith.constant 0.000000e+00 : f32
    %21 = vector.broadcast %cst_23 : f32 to vector<16x256xf32>
    %22 = arith.maximumf %20, %21 : vector<16x256xf32>
    %23 = arith.truncf %22 : vector<16x256xf32> to vector<16x256xbf16>
    %cst_24 = arith.constant dense<0.000000e+00> : vector<16x128xf32>
    %24 = tpu.matmul %23, %2, %cst_24 {dimension_numbers = #tpu.dot_dimension_numbers<[1], [0], [0], [1], [0, 0, 1, 1], [], []>} : vector<16x256xbf16>, vector<256x128xbf16>, vector<16x128xf32> -> vector<16x128xf32>
    %25 = vector.broadcast %7 : vector<1x128xf32> to vector<16x128xf32>
    %26 = arith.addf %24, %25 : vector<16x128xf32>
    %cst_25 = arith.constant 0.000000e+00 : f32
    %27 = vector.broadcast %cst_25 : f32 to vector<16x128xf32>
    %28 = arith.maximumf %26, %27 : vector<16x128xf32>
    %29 = arith.truncf %28 : vector<16x128xf32> to vector<16x128xbf16>
    %cst_26 = arith.constant dense<0.000000e+00> : vector<16x64xf32>
    %30 = tpu.matmul %29, %3, %cst_26 {dimension_numbers = #tpu.dot_dimension_numbers<[1], [0], [0], [1], [0, 0, 1, 1], [], []>} : vector<16x128xbf16>, vector<128x64xbf16>, vector<16x64xf32> -> vector<16x64xf32>
    %31 = vector.broadcast %8 : vector<1x64xf32> to vector<16x64xf32>
    %32 = arith.addf %30, %31 : vector<16x64xf32>
    %cst_27 = arith.constant 0.000000e+00 : f32
    %33 = vector.broadcast %cst_27 : f32 to vector<16x64xf32>
    %34 = arith.maximumf %32, %33 : vector<16x64xf32>
    %35 = arith.truncf %34 : vector<16x64xf32> to vector<16x64xbf16>
    %cst_28 = arith.constant dense<0.000000e+00> : vector<1x16xf32>
    %36 = tpu.matmul %4, %35, %cst_28 {dimension_numbers = #tpu.dot_dimension_numbers<[1], [1], [0], [0], [0, 0, 1, 0], [], []>} : vector<1x64xbf16>, vector<16x64xbf16>, vector<1x16xf32> -> vector<1x16xf32>
    %37 = vector.broadcast %9 : vector<1x1xf32> to vector<1x16xf32>
    %38 = arith.addf %36, %37 : vector<1x16xf32>
    %c0_29 = arith.constant 0 : index
    %c0_30 = arith.constant 0 : index
    %39 = vector.load %arg12[%c0_29, %c0_30] : memref<1x16xf32, #tpu.memory_space<vmem>>, vector<1x16xf32>
    tpu.vector_store %arg12[%c0_29, %c0_30], %38 {strides = array<i32>} : memref<1x16xf32, #tpu.memory_space<vmem>>, vector<1x16xf32>,
    return
  }
  func.func @transform_0(%arg0: i32) -> (i32, i32) {
    %c0_i32 = arith.constant 0 : i32
    %c0_i32_0 = arith.constant 0 : i32
    return %arg0, %c0_i32 : i32, i32
  }
  func.func @transform_1(%arg0: i32) -> (i32, i32) {
    %c0_i32 = arith.constant 0 : i32
    %c0_i32_0 = arith.constant 0 : i32
    %c0_i32_1 = arith.constant 0 : i32
    return %c0_i32, %c0_i32_0 : i32, i32
  }
  func.func @transform_2(%arg0: i32) -> (i32, i32) {
    %c0_i32 = arith.constant 0 : i32
    %c0_i32_0 = arith.constant 0 : i32
    %c0_i32_1 = arith.constant 0 : i32
    return %c0_i32, %c0_i32_0 : i32, i32
  }
  func.func @transform_3(%arg0: i32) -> (i32, i32) {
    %c0_i32 = arith.constant 0 : i32
    %c0_i32_0 = arith.constant 0 : i32
    %c0_i32_1 = arith.constant 0 : i32
    return %c0_i32, %c0_i32_0 : i32, i32
  }
  func.func @transform_4(%arg0: i32) -> (i32, i32) {
    %c0_i32 = arith.constant 0 : i32
    %c0_i32_0 = arith.constant 0 : i32
    %c0_i32_1 = arith.constant 0 : i32
    return %c0_i32, %c0_i32_0 : i32, i32
  }
  func.func @transform_5(%arg0: i32) -> (i32, i32) {
    %c0_i32 = arith.constant 0 : i32
    %c0_i32_0 = arith.constant 0 : i32
    %c0_i32_1 = arith.constant 0 : i32
    return %c0_i32, %c0_i32_0 : i32, i32
  }
  func.func @transform_6(%arg0: i32) -> (i32, i32) {
    %c0_i32 = arith.constant 0 : i32
    %c0_i32_0 = arith.constant 0 : i32
    %c0_i32_1 = arith.constant 0 : i32
    return %c0_i32, %c0_i32_0 : i32, i32
  }
  func.func @transform_7(%arg0: i32) -> (i32, i32) {
    %c0_i32 = arith.constant 0 : i32
    %c0_i32_0 = arith.constant 0 : i32
    %c0_i32_1 = arith.constant 0 : i32
    return %c0_i32, %c0_i32_0 : i32, i32
  }
  func.func @transform_8(%arg0: i32) -> (i32, i32) {
    %c0_i32 = arith.constant 0 : i32
    %c0_i32_0 = arith.constant 0 : i32
    %c0_i32_1 = arith.constant 0 : i32
    return %c0_i32, %c0_i32_0 : i32, i32
  }
  func.func @transform_9(%arg0: i32) -> (i32, i32) {
    %c0_i32 = arith.constant 0 : i32
    %c0_i32_0 = arith.constant 0 : i32
    %c0_i32_1 = arith.constant 0 : i32
    return %c0_i32, %c0_i32_0 : i32, i32
  }
  func.func @transform_10(%arg0: i32) -> (i32, i32) {
    %c0_i32 = arith.constant 0 : i32
    %c0_i32_0 = arith.constant 0 : i32
    %c0_i32_1 = arith.constant 0 : i32
    return %c0_i32, %c0_i32_0 : i32, i32
  }
  func.func @transform_11(%arg0: i32) -> (i32, i32) {
    %c0_i32 = arith.constant 0 : i32
    %c0_i32_0 = arith.constant 0 : i32
    return %c0_i32, %arg0 : i32, i32
  }
}

</mosaic_0001>

<llo_original>
// kernel: tpu_custom_call.1
$region0: #{tpu_custom_call.1}
  #allocation0 [shape = 'u32[]', space=smem, size = 0x4, offset = 0x4, fixed_abs, tag = 'smem constant byte address 0x4 - core index']
  #allocation1 [shape = 'u32[144,128]{1,0:T(1,128)}', space=vmem, size = 0x12000, scoped, tag = 'internal scratch']
  #allocation2 [shape = 'f32[1,1]{1,0:T(1,128)S(1)}', space=vmem, size = 0x200, scoped, tag = 'scoped memory for tpu_custom_call.1']
  %s0 = inlined_call_operand.vmem [shape: f32[16,32], index: 0, kind: input, shape index: {}]
  %s1 = inlined_call_operand.vmem [shape: bf16[32,128], index: 1, kind: input, shape index: {}]
  %s2 = inlined_call_operand.vmem [shape: f32[1,128], index: 2, kind: input, shape index: {}]
  %s3 = inlined_call_operand.hbm [shape: bf16[128,256], index: 3, kind: input, shape index: {}]
  %s4 = inlined_call_operand.vmem [shape: f32[1,256], index: 4, kind: input, shape index: {}]
  %s5 = inlined_call_operand.hbm [shape: bf16[256,128], index: 5, kind: input, shape index: {}]
  %s6 = inlined_call_operand.vmem [shape: f32[1,128], index: 6, kind: input, shape index: {}]
  %s7 = inlined_call_operand.vmem [shape: bf16[128,64], index: 7, kind: input, shape index: {}]
  %s8 = inlined_call_operand.vmem [shape: f32[1,64], index: 8, kind: input, shape index: {}]
  %s9 = inlined_call_operand.vmem [shape: bf16[1,64], index: 9, kind: input, shape index: {}]
  %s10 = inlined_call_operand.<no memory space> [shape: f32[1,1], index: 10, kind: input, shape index: {}]
  %s11 = inlined_call_operand.hbm [shape: f32[1,16], index: 11, kind: output, shape index: {}]
  %s12 = sld [smem:[#allocation0]]
  $region62: #{tpu_custom_call.1} parent=0
    _
  %s14 = ssub.s32 1, %s12
  %s15 = scalar_select 0, %s14, %s12
  %v16 = vstv %s10
  %17 = vst [vmem:[#allocation2] sm:$0x1] %v16
  $region1: #{tpu_custom_call.1} parent=0
    #allocation3 [shape = 'u8[65536]{0}', space=vmem, size = 0x10000, scoped, tag = 'input window, operand 3, single buffered']
    #allocation4 [shape = 's32[1]{0}', space=sflag, size = 0x4, scoped, tag = 'scoped memory for tpu_custom_call.1']
    #allocation5 [shape = 's32[1]{0}', space=sflag, size = 0x4, scoped, tag = 'scoped memory for tpu_custom_call.1']
    #allocation6 [shape = 'u8[65536]{0}', space=vmem, size = 0x10000, scoped, tag = 'input window, operand 5, single buffered']
    #allocation7 [shape = 's32[1]{0}', space=sflag, size = 0x4, scoped, tag = 'scoped memory for tpu_custom_call.1']
    #allocation8 [shape = 'u8[512]{0}', space=vmem, size = 0x400, scoped, tag = 'output window, operand 0, single buffered']
    %18 = vsyncpa [#allocation4], 0
    %19 = vsyncpa [#allocation7], 0
    %20 = vsyncpa [#allocation5], 0
    // Predicated region
    $region2: #{tpu_custom_call.1} parent=1 // pred_check
      _
    $region3: #{tpu_custom_call.1} parent=1 // pred_check_branch
      %22 = sbr.rel (0) target = $region5
    $region4: #{tpu_custom_call.1} parent=1 // pred_region
      _
    $region5: #{tpu_custom_call.1} parent=1 // pred_fallthru
      _
    // Predicated region
    $region6: #{tpu_custom_call.1} parent=1 // pred_check
      _
    $region7: #{tpu_custom_call.1} parent=1 // pred_check_branch
      %24 = sbr.rel (0) target = $region9
    $region8: #{tpu_custom_call.1} parent=1 // pred_region
      _
    $region9: #{tpu_custom_call.1} parent=1 // pred_fallthru
      _
    // Predicated region
    $region10: #{tpu_custom_call.1} parent=1 // pred_check
      _
    $region11: #{tpu_custom_call.1} parent=1 // pred_check_branch
      %26 = sbr.rel (0) target = $region13
    $region12: #{tpu_custom_call.1} parent=1 // pred_region
      _
    $region13: #{tpu_custom_call.1} parent=1 // pred_fallthru
      _
    // Predicated region
    $region14: #{tpu_custom_call.1} parent=1 // pred_check
      _
    $region15: #{tpu_custom_call.1} parent=1 // pred_check_branch
      %28 = sbr.rel (0) target = $region17
    $region16: #{tpu_custom_call.1} parent=1 // pred_region
      %s30 = ssub.s32 2048, 2048
      %31 = vsyncadd [#allocation4], %s30
      %s32 = sshll.u32 [#allocation3], 4
      %s33 = int_to_ptr.vmem [resolvable:$true] %s32
      %38 = dma.hbm_to_vmem [thread:$0]  %s3, 2048, %s33, [#allocation4], 128, 128, 8
    $region17: #{tpu_custom_call.1} parent=1 // pred_fallthru
      _
    // Predicated region
    $region18: #{tpu_custom_call.1} parent=1 // pred_check
      _
    $region19: #{tpu_custom_call.1} parent=1 // pred_check_branch
      %40 = sbr.rel (0) target = $region21
    $region20: #{tpu_custom_call.1} parent=1 // pred_region
      _
    $region21: #{tpu_custom_call.1} parent=1 // pred_fallthru
      _
    // Predicated region
    $region22: #{tpu_custom_call.1} parent=1 // pred_check
      _
    $region23: #{tpu_custom_call.1} parent=1 // pred_check_branch
      %42 = sbr.rel (0) target = $region25
    $region24: #{tpu_custom_call.1} parent=1 // pred_region
      %s44 = ssub.s32 2048, 2048
      %45 = vsyncadd [#allocation7], %s44
      %s46 = sshll.u32 [#allocation6], 4
      %s47 = int_to_ptr.vmem [resolvable:$true] %s46
      %52 = dma.hbm_to_vmem [thread:$0]  %s5, 2048, %s47, [#allocation7], 64, 64, 4
    $region25: #{tpu_custom_call.1} parent=1 // pred_fallthru
      _
    // Predicated region
    $region26: #{tpu_custom_call.1} parent=1 // pred_check
      _
    $region27: #{tpu_custom_call.1} parent=1 // pred_check_branch
      %54 = sbr.rel (0) target = $region29
    $region28: #{tpu_custom_call.1} parent=1 // pred_region
      _
    $region29: #{tpu_custom_call.1} parent=1 // pred_fallthru
      _
    // Predicated region
    $region30: #{tpu_custom_call.1} parent=1 // pred_check
      _
    $region31: #{tpu_custom_call.1} parent=1 // pred_check_branch
      %56 = sbr.rel (0) target = $region33
    $region32: #{tpu_custom_call.1} parent=1 // pred_region
      _
    $region33: #{tpu_custom_call.1} parent=1 // pred_fallthru
      _
    // Predicated region
    $region34: #{tpu_custom_call.1} parent=1 // pred_check
      _
    $region35: #{tpu_custom_call.1} parent=1 // pred_check_branch
      %58 = sbr.rel (0) target = $region37
    $region36: #{tpu_custom_call.1} parent=1 // pred_region
      _
    $region37: #{tpu_custom_call.1} parent=1 // pred_fallthru
      _
    // Predicated region
    $region38: #{tpu_custom_call.1} parent=1 // pred_check
      _
    $region39: #{tpu_custom_call.1} parent=1 // pred_check_branch
      %60 = sbr.rel (0) target = $region41
    $region40: #{tpu_custom_call.1} parent=1 // pred_region
      _
    $region41: #{tpu_custom_call.1} parent=1 // pred_fallthru
      _
    // Predicated region
    $region42: #{tpu_custom_call.1} parent=1 // pred_check
      _
    $region43: #{tpu_custom_call.1} parent=1 // pred_check_branch
      %62 = sbr.rel (0) target = $region45
    $region44: #{tpu_custom_call.1} parent=1 // pred_region
      _
    $region45: #{tpu_custom_call.1} parent=1 // pred_fallthru
      _
    // Predicated region
    $region46: #{tpu_custom_call.1} parent=1 // pred_check
      _
    $region47: #{tpu_custom_call.1} parent=1 // pred_check_branch
      %64 = sbr.rel (0) target = $region49
    $region48: #{tpu_custom_call.1} parent=1 // pred_region
      %65 = dma.done [#allocation4], 2048
    $region49: #{tpu_custom_call.1} parent=1 // pred_fallthru
      _
    // Predicated region
    $region50: #{tpu_custom_call.1} parent=1 // pred_check
      _
    $region51: #{tpu_custom_call.1} parent=1 // pred_check_branch
      %67 = sbr.rel (0) target = $region53
    $region52: #{tpu_custom_call.1} parent=1 // pred_region
      %68 = dma.done [#allocation7], 2048
    $region53: #{tpu_custom_call.1} parent=1 // pred_fallthru
      _
    %v70 = vld [vmem:[%s1] sm:$0xf]
    %v71 = vld [vmem:[%s1 + $0x4] sm:$0xf]
    %v72 = vld [vmem:[%s1 + $0x8] sm:$0xf]
    %v73 = vld [vmem:[%s1 + $0xc] sm:$0xf]
    %v74 = vld [vmem:[#allocation3] sm:$0xff]
    %v75 = vld [vmem:[#allocation3 + $0x8] sm:$0xff]
    %v76 = vld [vmem:[#allocation3 + $0x10] sm:$0xff]
    %v77 = vld [vmem:[#allocation3 + $0x18] sm:$0xff]
    %v78 = vld [vmem:[#allocation3 + $0x20] sm:$0xff]
    %v79 = vld [vmem:[#allocation3 + $0x28] sm:$0xff]
    %v80 = vld [vmem:[#allocation3 + $0x30] sm:$0xff]
    %v81 = vld [vmem:[#allocation3 + $0x38] sm:$0xff]
    %v82 = vld [vmem:[#allocation3 + $0x40] sm:$0xff]
    %v83 = vld [vmem:[#allocation3 + $0x48] sm:$0xff]
    %v84 = vld [vmem:[#allocation3 + $0x50] sm:$0xff]
    %v85 = vld [vmem:[#allocation3 + $0x58] sm:$0xff]
    %v86 = vld [vmem:[#allocation3 + $0x60] sm:$0xff]
    %v87 = vld [vmem:[#allocation3 + $0x68] sm:$0xff]
    %v88 = vld [vmem:[#allocation3 + $0x70] sm:$0xff]
    %v89 = vld [vmem:[#allocation3 + $0x78] sm:$0xff]
    %v90 = vld [vmem:[#allocation6] sm:$0xf]
    %v91 = vld [vmem:[#allocation6 + $0x4] sm:$0xf]
    %v92 = vld [vmem:[#allocation6 + $0x8] sm:$0xf]
    %v93 = vld [vmem:[#allocation6 + $0xc] sm:$0xf]
    %v94 = vld [vmem:[#allocation6 + $0x10] sm:$0xf]
    %v95 = vld [vmem:[#allocation6 + $0x14] sm:$0xf]
    %v96 = vld [vmem:[#allocation6 + $0x18] sm:$0xf]
    %v97 = vld [vmem:[#allocation6 + $0x1c] sm:$0xf]
    %v98 = vld [vmem:[#allocation6 + $0x20] sm:$0xf]
    %v99 = vld [vmem:[#allocation6 + $0x24] sm:$0xf]
    %v100 = vld [vmem:[#allocation6 + $0x28] sm:$0xf]
    %v101 = vld [vmem:[#allocation6 + $0x2c] sm:$0xf]
    %v102 = vld [vmem:[#allocation6 + $0x30] sm:$0xf]
    %v103 = vld [vmem:[#allocation6 + $0x34] sm:$0xf]
    %v104 = vld [vmem:[#allocation6 + $0x38] sm:$0xf]
    %v105 = vld [vmem:[#allocation6 + $0x3c] sm:$0xf]
    %v106 = vld [vmem:[#allocation6 + $0x40] sm:$0xf]
    %v107 = vld [vmem:[#allocation6 + $0x44] sm:$0xf]
    %v108 = vld [vmem:[#allocation6 + $0x48] sm:$0xf]
    %v109 = vld [vmem:[#allocation6 + $0x4c] sm:$0xf]
    %v110 = vld [vmem:[#allocation6 + $0x50] sm:$0xf]
    %v111 = vld [vmem:[#allocation6 + $0x54] sm:$0xf]
    %v112 = vld [vmem:[#allocation6 + $0x58] sm:$0xf]
    %v113 = vld [vmem:[#allocation6 + $0x5c] sm:$0xf]
    %v114 = vld [vmem:[#allocation6 + $0x60] sm:$0xf]
    %v115 = vld [vmem:[#allocation6 + $0x64] sm:$0xf]
    %v116 = vld [vmem:[#allocation6 + $0x68] sm:$0xf]
    %v117 = vld [vmem:[#allocation6 + $0x6c] sm:$0xf]
    %v118 = vld [vmem:[#allocation6 + $0x70] sm:$0xf]
    %v119 = vld [vmem:[#allocation6 + $0x74] sm:$0xf]
    %v120 = vld [vmem:[#allocation6 + $0x78] sm:$0xf]
    %v121 = vld [vmem:[#allocation6 + $0x7c] sm:$0xf]
    %v122 = vld [vmem:[%s7] sm:$0xf]
    %v123 = vld [vmem:[%s7 + $0x4] sm:$0xf]
    %v124 = vld [vmem:[%s7 + $0x8] sm:$0xf]
    %v125 = vld [vmem:[%s7 + $0xc] sm:$0xf]
    %v126 = vld [vmem:[%s7 + $0x10] sm:$0xf]
    %v127 = vld [vmem:[%s7 + $0x14] sm:$0xf]
    %v128 = vld [vmem:[%s7 + $0x18] sm:$0xf]
    %v129 = vld [vmem:[%s7 + $0x1c] sm:$0xf]
    %v130 = vld [vmem:[%s7 + $0x20] sm:$0xf]
    %v131 = vld [vmem:[%s7 + $0x24] sm:$0xf]
    %v132 = vld [vmem:[%s7 + $0x28] sm:$0xf]
    %v133 = vld [vmem:[%s7 + $0x2c] sm:$0xf]
    %v134 = vld [vmem:[%s7 + $0x30] sm:$0xf]
    %v135 = vld [vmem:[%s7 + $0x34] sm:$0xf]
    %v136 = vld [vmem:[%s7 + $0x38] sm:$0xf]
    %v137 = vld [vmem:[%s7 + $0x3c] sm:$0xf]
    %v138 = vld [vmem:[%s9] sm:$0x1]
    %v139 = vld [vmem:[%s2] sm:$0x1]
    %v140 = vld [vmem:[%s4] sm:$0x3]
    %v141 = vld [vmem:[%s6] sm:$0x1]
    %v142 = vld [vmem:[%s8] sm:$0x1]
    %v143 = vld [vmem:[#allocation2] sm:$0x1]
    %v144 = vld [vmem:[%s0] sm:$0xff]
    %v145 = vld [vmem:[%s0 + $0x8] sm:$0xff]
    %v146 = vpack.c.bf16 %v145, %v144
    %v148 = vlaneseq
    %v149 = vshrl.u32 %v148, 7
    %v150 = vsub.s32 0, %v149
    %v151 = vrot.slane %v139, %v150
    %v157 = vunpack.c.l.b16 %v70
    %v158 = vunpack.c.l.b16 %v71
    %v159 = vunpack.c.l.b16 %v72
    %v160 = vunpack.c.l.b16 %v73
    %v161 = vpack.c.b16 %v158, %v157
    %v162 = vpack.c.b16 %v160, %v159
    %vm165 = vcmask 261120
    %v167 = vsel %vm165, %v146, 0
    %169 = vmatprep.subr.bf16.mxu0 0
    %170 = vmatpush1.bf16.msra.mxu0 %v161
    %171 = vmatprep.subr.bf16.mxu0 0
    %172 = vmatpush1.bf16.msra.mxu0 %v162
    %173 = vmatprep.subr.bf16.mxu0 0
    %174 = vmatpush1.bf16.msra.mxu0 0
    %175 = vmatprep.subr.bf16.mxu0 0
    %176 = vmatpush1.bf16.msra.mxu0 0
    %177 = vmatprep.subr.bf16.mxu0 0
    %178 = vmatpush1.bf16.msra.mxu0 0
    %179 = vmatprep.subr.bf16.mxu0 0
    %180 = vmatpush1.bf16.msra.mxu0 0
    %181 = vmatprep.subr.bf16.mxu0 0
    %182 = vmatpush1.bf16.msra.mxu0 0
    %183 = vmatprep.subr.bf16.mxu0 0
    %184 = vmatpush1.bf16.msra.mxu0 0
    %185 = vmatprep.subr.bf16.mxu0 0
    %186 = vmatpush1.bf16.msra.mxu0 0
    %187 = vmatprep.subr.bf16.mxu0 0
    %188 = vmatpush1.bf16.msra.mxu0 0
    %189 = vmatprep.subr.bf16.mxu0 0
    %190 = vmatpush1.bf16.msra.mxu0 0
    %191 = vmatprep.subr.bf16.mxu0 0
    %192 = vmatpush1.bf16.msra.mxu0 0
    %193 = vmatprep.subr.bf16.mxu0 0
    %194 = vmatpush1.bf16.msra.mxu0 0
    %195 = vmatprep.subr.bf16.mxu0 0
    %196 = vmatpush1.bf16.msra.mxu0 0
    %197 = vmatprep.subr.bf16.mxu0 0
    %198 = vmatpush1.bf16.msra.mxu0 0
    %199 = vmatprep.subr.bf16.mxu0 0
    %200 = vmatpush1.bf16.msra.mxu0 0
    %201 = vmatprep.mubr.bf16.mxu0 0
    %202 = vmatmul.mubr.bf16.gmra.mrb[0].mxu0 %v167
    %v203 = vpop.f32.mrb[0].mxu0
    %v204 = vadd.f32 %v151, %v203
    %v205 = vpop.f32.mrb[0].mxu0
    %v206 = vpop.f32.mrb[0].mxu0
    %v207 = vadd.f32 %v151, %v206
    %v208 = vpop.f32.mrb[0].mxu0
    %209 = vdwg.mxu0
    %v210 = vmax.f32 %v204, 0.0
    %v211 = vmax.f32 %v207, 0.0
    %v212 = vpack.c.bf16 %v211, %v210
    %v214 = vlaneseq
    %v215 = vshrl.u32 %v214, 7
    %v216 = vsub.s32 0, %v215
    %v217 = vrot.slane %v140, %v216
    %v218 = vlaneseq
    %v219 = vshrl.u32 %v218, 7
    %v220 = vsub.s32 1, %v219
    %v221 = vrot.slane %v140, %v220
    %v240 = vunpack.c.l.b16 %v74
    %v241 = vunpack.c.h.b16 %v74
    %v242 = vunpack.c.l.b16 %v75
    %v243 = vunpack.c.h.b16 %v75
    %v244 = vunpack.c.l.b16 %v76
    %v245 = vunpack.c.h.b16 %v76
    %v246 = vunpack.c.l.b16 %v77
    %v247 = vunpack.c.h.b16 %v77
    %v248 = vunpack.c.l.b16 %v78
    %v249 = vunpack.c.h.b16 %v78
    %v250 = vunpack.c.l.b16 %v79
    %v251 = vunpack.c.h.b16 %v79
    %v252 = vunpack.c.l.b16 %v80
    %v253 = vunpack.c.h.b16 %v80
    %v254 = vunpack.c.l.b16 %v81
    %v255 = vunpack.c.h.b16 %v81
    %v256 = vunpack.c.l.b16 %v82
    %v257 = vunpack.c.h.b16 %v82
    %v258 = vunpack.c.l.b16 %v83
    %v259 = vunpack.c.h.b16 %v83
    %v260 = vunpack.c.l.b16 %v84
    %v261 = vunpack.c.h.b16 %v84
    %v262 = vunpack.c.l.b16 %v85
    %v263 = vunpack.c.h.b16 %v85
    %v264 = vunpack.c.l.b16 %v86
    %v265 = vunpack.c.h.b16 %v86
    %v266 = vunpack.c.l.b16 %v87
    %v267 = vunpack.c.h.b16 %v87
    %v268 = vunpack.c.l.b16 %v88
    %v269 = vunpack.c.h.b16 %v88
    %v270 = vunpack.c.l.b16 %v89
    %v271 = vunpack.c.h.b16 %v89
    %v272 = vpack.c.b16 %v242, %v240
    %v273 = vpack.c.b16 %v243, %v241
    %v274 = vpack.c.b16 %v246, %v244
    %v275 = vpack.c.b16 %v247, %v245
    %v276 = vpack.c.b16 %v250, %v248
    %v277 = vpack.c.b16 %v251, %v249
    %v278 = vpack.c.b16 %v254, %v252
    %v279 = vpack.c.b16 %v255, %v253
    %v280 = vpack.c.b16 %v258, %v256
    %v281 = vpack.c.b16 %v259, %v257
    %v282 = vpack.c.b16 %v262, %v260
    %v283 = vpack.c.b16 %v263, %v261
    %v284 = vpack.c.b16 %v266, %v264
    %v285 = vpack.c.b16 %v267, %v265
    %v286 = vpack.c.b16 %v270, %v268
    %v287 = vpack.c.b16 %v271, %v269
    %304 = vmatprep.subr.bf16.mxu0 %v273
    %305 = vmatpush1.bf16.msra.mxu0 %v272
    %306 = vmatprep.subr.bf16.mxu0 %v275
    %307 = vmatpush1.bf16.msra.mxu0 %v274
    %308 = vmatprep.subr.bf16.mxu0 %v277
    %309 = vmatpush1.bf16.msra.mxu0 %v276
    %310 = vmatprep.subr.bf16.mxu0 %v279
    %311 = vmatpush1.bf16.msra.mxu0 %v278
    %312 = vmatprep.subr.bf16.mxu0 %v281
    %313 = vmatpush1.bf16.msra.mxu0 %v280
    %314 = vmatprep.subr.bf16.mxu0 %v283
    %315 = vmatpush1.bf16.msra.mxu0 %v282
    %316 = vmatprep.subr.bf16.mxu0 %v285
    %317 = vmatpush1.bf16.msra.mxu0 %v284
    %318 = vmatprep.subr.bf16.mxu0 %v287
    %319 = vmatpush1.bf16.msra.mxu0 %v286
    %320 = vmatprep.subr.bf16.mxu0 0
    %321 = vmatpush1.bf16.msra.mxu0 0
    %322 = vmatprep.subr.bf16.mxu0 0
    %323 = vmatpush1.bf16.msra.mxu0 0
    %324 = vmatprep.subr.bf16.mxu0 0
    %325 = vmatpush1.bf16.msra.mxu0 0
    %326 = vmatprep.subr.bf16.mxu0 0
    %327 = vmatpush1.bf16.msra.mxu0 0
    %328 = vmatprep.subr.bf16.mxu0 0
    %329 = vmatpush1.bf16.msra.mxu0 0
    %330 = vmatprep.subr.bf16.mxu0 0
    %331 = vmatpush1.bf16.msra.mxu0 0
    %332 = vmatprep.subr.bf16.mxu0 0
    %333 = vmatpush1.bf16.msra.mxu0 0
    %334 = vmatprep.subr.bf16.mxu0 0
    %335 = vmatpush1.bf16.msra.mxu0 0
    %336 = vmatprep.mubr.bf16.mxu0 0
    %337 = vmatmul.mubr.bf16.gmra.mrb[0].mxu0 %v212
    %v338 = vpop.f32.mrb[0].mxu0
    %v339 = vadd.f32 %v217, %v338
    %v340 = vpop.f32.mrb[0].mxu0
    %v341 = vadd.f32 %v221, %v340
    %v342 = vpop.f32.mrb[0].mxu0
    %v343 = vadd.f32 %v217, %v342
    %v344 = vpop.f32.mrb[0].mxu0
    %v345 = vadd.f32 %v221, %v344
    %346 = vdwg.mxu0
    %v347 = vmax.f32 %v339, 0.0
    %v348 = vmax.f32 %v341, 0.0
    %v349 = vmax.f32 %v343, 0.0
    %v350 = vmax.f32 %v345, 0.0
    %v351 = vpack.c.bf16 %v349, %v347
    %v352 = vpack.c.bf16 %v350, %v348
    %v354 = vlaneseq
    %v355 = vshrl.u32 %v354, 7
    %v356 = vsub.s32 0, %v355
    %v357 = vrot.slane %v141, %v356
    %v391 = vunpack.c.l.b16 %v90
    %v392 = vunpack.c.l.b16 %v91
    %v393 = vunpack.c.l.b16 %v92
    %v394 = vunpack.c.l.b16 %v93
    %v395 = vunpack.c.l.b16 %v94
    %v396 = vunpack.c.l.b16 %v95
    %v397 = vunpack.c.l.b16 %v96
    %v398 = vunpack.c.l.b16 %v97
    %v399 = vunpack.c.l.b16 %v98
    %v400 = vunpack.c.l.b16 %v99
    %v401 = vunpack.c.l.b16 %v100
    %v402 = vunpack.c.l.b16 %v101
    %v403 = vunpack.c.l.b16 %v102
    %v404 = vunpack.c.l.b16 %v103
    %v405 = vunpack.c.l.b16 %v104
    %v406 = vunpack.c.l.b16 %v105
    %v407 = vunpack.c.l.b16 %v106
    %v408 = vunpack.c.l.b16 %v107
    %v409 = vunpack.c.l.b16 %v108
    %v410 = vunpack.c.l.b16 %v109
    %v411 = vunpack.c.l.b16 %v110
    %v412 = vunpack.c.l.b16 %v111
    %v413 = vunpack.c.l.b16 %v112
    %v414 = vunpack.c.l.b16 %v113
    %v415 = vunpack.c.l.b16 %v114
    %v416 = vunpack.c.l.b16 %v115
    %v417 = vunpack.c.l.b16 %v116
    %v418 = vunpack.c.l.b16 %v117
    %v419 = vunpack.c.l.b16 %v118
    %v420 = vunpack.c.l.b16 %v119
    %v421 = vunpack.c.l.b16 %v120
    %v422 = vunpack.c.l.b16 %v121
    %v423 = vpack.c.b16 %v392, %v391
    %v424 = vpack.c.b16 %v394, %v393
    %v425 = vpack.c.b16 %v396, %v395
    %v426 = vpack.c.b16 %v398, %v397
    %v427 = vpack.c.b16 %v400, %v399
    %v428 = vpack.c.b16 %v402, %v401
    %v429 = vpack.c.b16 %v404, %v403
    %v430 = vpack.c.b16 %v406, %v405
    %v431 = vpack.c.b16 %v408, %v407
    %v432 = vpack.c.b16 %v410, %v409
    %v433 = vpack.c.b16 %v412, %v411
    %v434 = vpack.c.b16 %v414, %v413
    %v435 = vpack.c.b16 %v416, %v415
    %v436 = vpack.c.b16 %v418, %v417
    %v437 = vpack.c.b16 %v420, %v419
    %v438 = vpack.c.b16 %v422, %v421
    %455 = vmatprep.subr.bf16.mxu0 0
    %456 = vmatpush1.bf16.msra.mxu0 %v423
    %457 = vmatprep.subr.bf16.mxu0 0
    %458 = vmatpush1.bf16.msra.mxu0 %v424
    %459 = vmatprep.subr.bf16.mxu0 0
    %460 = vmatpush1.bf16.msra.mxu0 %v425
    %461 = vmatprep.subr.bf16.mxu0 0
    %462 = vmatpush1.bf16.msra.mxu0 %v426
    %463 = vmatprep.subr.bf16.mxu0 0
    %464 = vmatpush1.bf16.msra.mxu0 %v427
    %465 = vmatprep.subr.bf16.mxu0 0
    %466 = vmatpush1.bf16.msra.mxu0 %v428
    %467 = vmatprep.subr.bf16.mxu0 0
    %468 = vmatpush1.bf16.msra.mxu0 %v429
    %469 = vmatprep.subr.bf16.mxu0 0
    %470 = vmatpush1.bf16.msra.mxu0 %v430
    %471 = vmatprep.subr.bf16.mxu0 0
    %472 = vmatpush1.bf16.msra.mxu0 %v431
    %473 = vmatprep.subr.bf16.mxu0 0
    %474 = vmatpush1.bf16.msra.mxu0 %v432
    %475 = vmatprep.subr.bf16.mxu0 0
    %476 = vmatpush1.bf16.msra.mxu0 %v433
    %477 = vmatprep.subr.bf16.mxu0 0
    %478 = vmatpush1.bf16.msra.mxu0 %v434
    %479 = vmatprep.subr.bf16.mxu0 0
    %480 = vmatpush1.bf16.msra.mxu0 %v435
    %481 = vmatprep.subr.bf16.mxu0 0
    %482 = vmatpush1.bf16.msra.mxu0 %v436
    %483 = vmatprep.subr.bf16.mxu0 0
    %484 = vmatpush1.bf16.msra.mxu0 %v437
    %485 = vmatprep.subr.bf16.mxu0 0
    %486 = vmatpush1.bf16.msra.mxu0 %v438
    %487 = vmatprep.mubr.bf16.mxu0 %v352
    %488 = vmatmul.mubr.bf16.gmra.mrb[0].mxu0 %v351
    %v489 = vpop.f32.mrb[0].mxu0
    %v490 = vadd.f32 %v357, %v489
    %v491 = vpop.f32.mrb[0].mxu0
    %v492 = vpop.f32.mrb[0].mxu0
    %v493 = vadd.f32 %v357, %v492
    %v494 = vpop.f32.mrb[0].mxu0
    %495 = vdwg.mxu0
    %v496 = vmax.f32 %v490, 0.0
    %v497 = vmax.f32 %v493, 0.0
    %v498 = vpack.c.bf16 %v497, %v496
    %v500 = vlaneseq
    %v501 = vshrl.u32 %v500, 7
    %v502 = vsub.s32 0, %v501
    %v503 = vrot.slane %v142, %v502
    %v521 = vunpack.c.l.b16 %v122
    %v522 = vunpack.c.l.b16 %v123
    %v523 = vunpack.c.l.b16 %v124
    %v524 = vunpack.c.l.b16 %v125
    %v525 = vunpack.c.l.b16 %v126
    %v526 = vunpack.c.l.b16 %v127
    %v527 = vunpack.c.l.b16 %v128
    %v528 = vunpack.c.l.b16 %v129
    %v529 = vunpack.c.l.b16 %v130
    %v530 = vunpack.c.l.b16 %v131
    %v531 = vunpack.c.l.b16 %v132
    %v532 = vunpack.c.l.b16 %v133
    %v533 = vunpack.c.l.b16 %v134
    %v534 = vunpack.c.l.b16 %v135
    %v535 = vunpack.c.l.b16 %v136
    %v536 = vunpack.c.l.b16 %v137
    %v537 = vpack.c.b16 %v522, %v521
    %v538 = vpack.c.b16 %v524, %v523
    %v539 = vpack.c.b16 %v526, %v525
    %v540 = vpack.c.b16 %v528, %v527
    %v541 = vpack.c.b16 %v530, %v529
    %v542 = vpack.c.b16 %v532, %v531
    %v543 = vpack.c.b16 %v534, %v533
    %v544 = vpack.c.b16 %v536, %v535
    %553 = vmatprep.subr.bf16.mxu0 0
    %554 = vmatpush1.bf16.msra.mxu0 %v537
    %555 = vmatprep.subr.bf16.mxu0 0
    %556 = vmatpush1.bf16.msra.mxu0 %v538
    %557 = vmatprep.subr.bf16.mxu0 0
    %558 = vmatpush1.bf16.msra.mxu0 %v539
    %559 = vmatprep.subr.bf16.mxu0 0
    %560 = vmatpush1.bf16.msra.mxu0 %v540
    %561 = vmatprep.subr.bf16.mxu0 0
    %562 = vmatpush1.bf16.msra.mxu0 %v541
    %563 = vmatprep.subr.bf16.mxu0 0
    %564 = vmatpush1.bf16.msra.mxu0 %v542
    %565 = vmatprep.subr.bf16.mxu0 0
    %566 = vmatpush1.bf16.msra.mxu0 %v543
    %567 = vmatprep.subr.bf16.mxu0 0
    %568 = vmatpush1.bf16.msra.mxu0 %v544
    %569 = vmatprep.subr.bf16.mxu0 0
    %570 = vmatpush1.bf16.msra.mxu0 0
    %571 = vmatprep.subr.bf16.mxu0 0
    %572 = vmatpush1.bf16.msra.mxu0 0
    %573 = vmatprep.subr.bf16.mxu0 0
    %574 = vmatpush1.bf16.msra.mxu0 0
    %575 = vmatprep.subr.bf16.mxu0 0
    %576 = vmatpush1.bf16.msra.mxu0 0
    %577 = vmatprep.subr.bf16.mxu0 0
    %578 = vmatpush1.bf16.msra.mxu0 0
    %579 = vmatprep.subr.bf16.mxu0 0
    %580 = vmatpush1.bf16.msra.mxu0 0
    %581 = vmatprep.subr.bf16.mxu0 0
    %582 = vmatpush1.bf16.msra.mxu0 0
    %583 = vmatprep.subr.bf16.mxu0 0
    %584 = vmatpush1.bf16.msra.mxu0 0
    %585 = vmatprep.mubr.bf16.mxu0 0
    %586 = vmatmul.mubr.bf16.gmra.mrb[0].mxu0 %v498
    %v587 = vpop.f32.mrb[0].mxu0
    %v588 = vadd.f32 %v503, %v587
    %v589 = vpop.f32.mrb[0].mxu0
    %v590 = vpop.f32.mrb[0].mxu0
    %v591 = vadd.f32 %v503, %v590
    %v592 = vpop.f32.mrb[0].mxu0
    %593 = vdwg.mxu0
    %v594 = vmax.f32 %v588, 0.0
    %v595 = vmax.f32 %v591, 0.0
    %v596 = vpack.c.bf16 %v595, %v594
    %598 = vset.pattern.permute.xlu0 0
    %599 = vperm.xlu0 %598, %v143
    %v600 = vpop.permute.xlu0 %599
    %v602 = vlaneseq
    %v603 = vshrl.u32 %v602, 7
    %v604 = vsub.s32 0, %v603
    %v605 = vrot.slane %v600, %v604
    %vm606 = vcmask 523264
    %v608 = vsel %vm606, %v138, 0
    %v611 = vsel %vm606, %v596, 0
    %613 = vmatprep.subr.bf16.mxu0 0
    %614 = vmatpush1.bf16.xpose.msra.mxu0 %v611
    %615 = vmatprep.subr.bf16.mxu0 0
    %616 = vmatpush1.bf16.xpose.msra.mxu0 0
    %617 = vmatprep.subr.bf16.mxu0 0
    %618 = vmatpush1.bf16.xpose.msra.mxu0 0
    %619 = vmatprep.subr.bf16.mxu0 0
    %620 = vmatpush1.bf16.xpose.msra.mxu0 0
    %621 = vmatprep.subr.bf16.mxu0 0
    %622 = vmatpush1.bf16.xpose.msra.mxu0 0
    %623 = vmatprep.subr.bf16.mxu0 0
    %624 = vmatpush1.bf16.xpose.msra.mxu0 0
    %625 = vmatprep.subr.bf16.mxu0 0
    %626 = vmatpush1.bf16.xpose.msra.mxu0 0
    %627 = vmatprep.subr.bf16.mxu0 0
    %628 = vmatpush1.bf16.xpose.msra.mxu0 0
    %629 = vmatprep.subr.bf16.mxu0 0
    %630 = vmatpush1.bf16.xpose.msra.mxu0 0
    %631 = vmatprep.subr.bf16.mxu0 0
    %632 = vmatpush1.bf16.xpose.msra.mxu0 0
    %633 = vmatprep.subr.bf16.mxu0 0
    %634 = vmatpush1.bf16.xpose.msra.mxu0 0
    %635 = vmatprep.subr.bf16.mxu0 0
    %636 = vmatpush1.bf16.xpose.msra.mxu0 0
    %637 = vmatprep.subr.bf16.mxu0 0
    %638 = vmatpush1.bf16.xpose.msra.mxu0 0
    %639 = vmatprep.subr.bf16.mxu0 0
    %640 = vmatpush1.bf16.xpose.msra.mxu0 0
    %641 = vmatprep.subr.bf16.mxu0 0
    %642 = vmatpush1.bf16.xpose.msra.mxu0 0
    %643 = vmatprep.subr.bf16.mxu0 0
    %644 = vmatpush1.bf16.xpose.msra.mxu0 0
    %645 = vmatprep.mubr.bf16.mxu0 0
    %646 = vmatmul.mubr.bf16.gmra.mrb[0].mxu0 %v608
    %v647 = vpop.f32.mrb[0].mxu0
    %v648 = vadd.f32 %v605, %v647
    %v649 = vpop.f32.mrb[0].mxu0
    %v650 = vpop.f32.mrb[0].mxu0
    %v651 = vpop.f32.mrb[0].mxu0
    %652 = vdwg.mxu0
    %vm653 = vcmask 122880
    %654 = vst.msk [vmem:[#allocation8] sm:$0x1] %vm653, %v648
    // Predicated region
    $region54: #{tpu_custom_call.1} parent=1 // pred_check
      _
    $region55: #{tpu_custom_call.1} parent=1 // pred_check_branch
      %656 = sbr.rel (0) target = $region57
    $region56: #{tpu_custom_call.1} parent=1 // pred_region
      %s658 = ssub.s32 16, 16
      %659 = vsyncadd [#allocation5], %s658
      %s661 = sshll.u32 [#allocation8], 4
      %s662 = int_to_ptr.vmem [resolvable:$true] %s661
      %664 = dma.vmem_to_hbm [thread:$0]  %s662, 16, %s11, [#allocation5]
    $region57: #{tpu_custom_call.1} parent=1 // pred_fallthru
      _
    // Predicated region
    $region58: #{tpu_custom_call.1} parent=1 // pred_check
      _
    $region59: #{tpu_custom_call.1} parent=1 // pred_check_branch
      %666 = sbr.rel (0) target = $region61
    $region60: #{tpu_custom_call.1} parent=1 // pred_region
      %667 = dma.done [#allocation5], 16
    $region61: #{tpu_custom_call.1} parent=1 // pred_fallthru
      _
    %668 = vsyncpa [#allocation4], 1
    %669 = vsyncpa [#allocation7], 1
    %670 = vsyncpa [#allocation5], 1

</llo_original>
